<compile_context>
chip_gen: v7x
topology: tpu7x:2x2x1
jax: 0.10.0
libtpu: 0.0.40
codegen_flags: <defaults>
</compile_context>

<pallas_src>
import jax
import jax.numpy as jnp
from jax.experimental import pallas as pl
from jax.experimental.pallas import tpu as pltpu


def _round_up(x: int, m: int) -> int:
    return ((x + m - 1) // m) * m


def _ode_kernel(x_ref, o_ref):
    # x_ref / o_ref: [6, TB] tiles — features on sublanes, batch on lanes.
    x = x_ref[...]                      # [6, TB]
    z0 = x[0:1, :]                      # [1, TB]
    z1 = x[1:2, :]
    a = x[2:3, :]
    b = x[3:4, :]
    c = x[4:5, :]
    d = x[5:6, :]

    z0z1 = z0 * z1                      # hoisted common subexpression

    # Zero the whole tile once (covers the 4 zero-dynamics parameter rows),
    # then overwrite the two state rows with direct sub-ref stores — no
    # lane-axis concatenate, no XLU shuffles, no extra full-tile temporary.
    o_ref[...] = jnp.zeros_like(x)
    o_ref[0:1, :] = a * z0 - b * z0z1   # d(prey)/dt
    o_ref[1:2, :] = d * z0z1 - c * z1   # d(predator)/dt


def ode_forward(t, input_t, *, lane_tile=4096):
    """Pallas equivalent of ODE.forward(t, input_t).

    `t` is unused (as in the PyTorch module); kept for signature parity.
    input_t: [B, 6] float array (columns = [z0, z1, a, b, c, d]).
    returns: [B, 6] float array (columns = [dz0/dt, dz1/dt, 0, 0, 0, 0]).
    """
    del t
    B, F = input_t.shape
    assert F == 6, "expected 2 state dims + 4 params"

    # ---- layout plumbing in the wrapper (not the kernel) ----
    x_t = input_t.T                                   # [6, B] (lane-dense batch)
    tb = min(lane_tile, _round_up(B, 128))            # lane tile, multiple of 128
    b_pad = _round_up(B, tb)
    if b_pad != B:
        x_t = jnp.pad(x_t, ((0, 0), (0, b_pad - B)))  # zero-pad batch lanes

    grid = (b_pad // tb,)

    out_t = pl.pallas_call(
        _ode_kernel,
        out_shape=jax.ShapeDtypeStruct((F, b_pad), input_t.dtype),
        grid_spec=pltpu.PrefetchScalarGridSpec(
            num_scalar_prefetch=0,
            grid=grid,
            # Sublane dim (6) equals the full array dim → legal block shape;
            # lane dim (tb) is a multiple of 128 → unmasked, lane-dense vst.
            in_specs=[pl.BlockSpec((F, tb), lambda i: (0, i))],
            out_specs=pl.BlockSpec((F, tb), lambda i: (0, i)),
        ),
        compiler_params=pltpu.CompilerParams(
            dimension_semantics=("parallel",),        # split grid across TCs (v7x)
            vmem_limit_bytes=32 * 1024 * 1024,
        ),
    )(x_t)

    return out_t[:, :B].T                             # back to [B, 6]


def ode_forward_ref(t, input_t):
    """Pure-JAX reference mirroring the PyTorch semantics."""
    del t
    z0 = input_t[:, 0]
    z1 = input_t[:, 1]
    a = input_t[:, 2]
    b = input_t[:, 3]
    c = input_t[:, 4]
    d = input_t[:, 5]
    dz0 = a * z0 - b * z0 * z1
    dz1 = d * z0 * z1 - c * z1
    zeros_params = jnp.zeros_like(input_t[:, 2:])
    return jnp.concatenate([dz0[:, None], dz1[:, None], zeros_params], axis=1)


if __name__ == "__main__":
    key = jax.random.PRNGKey(0)
    B = 8
    # [B, 6]: 2 latent state dims + 4 ODE parameters (a, b, c, d)
    input_t = jax.random.uniform(key, (B, 6), dtype=jnp.float32, minval=0.1, maxval=2.0)
    t = jnp.float32(0.0)  # unused, kept for API parity with torch module

    out = ode_forward(t, input_t)
    out = jax.block_until_ready(out)

    ref = ode_forward_ref(t, input_t)
    assert out.shape == (B, 6)
    assert out.dtype == input_t.dtype
    assert jnp.allclose(out, ref, atol=1e-6, rtol=1e-6), "mismatch vs reference"

    # Also sanity-check a batch that exercises padding + multi-tile grid.
    B2 = 5000
    x2 = jax.random.uniform(jax.random.PRNGKey(1), (B2, 6), dtype=jnp.float32,
                            minval=0.1, maxval=2.0)
    out2 = jax.block_until_ready(ode_forward(t, x2))
    assert jnp.allclose(out2, ode_forward_ref(t, x2), atol=1e-6, rtol=1e-6)

    print("KERNEL_OK")
</pallas_src>

<mosaic_0001>
module attributes {stable_mosaic.version = 11 : i64} {
  func.func @_ode_kernel(%arg0: i32, %arg1: memref<6x128xf32, #tpu.memory_space<vmem>>, %arg2: memref<6x128xf32, #tpu.memory_space<vmem>>) attributes {dimension_semantics = [#tpu.dimension_semantics<parallel>], iteration_bounds = array<i64: 1>, scalar_prefetch = 0 : i64, scratch_operands = 0 : i64, tpu.core_type = #tpu.core_type<tc>, window_params = [{transform_indices = @transform_0, window_bounds = array<i64: 6, 128>}, {transform_indices = @transform_1, window_bounds = array<i64: 6, 128>}]} {
    %c0 = arith.constant 0 : index
    %c0_0 = arith.constant 0 : index
    %0 = vector.load %arg1[%c0, %c0_0] : memref<6x128xf32, #tpu.memory_space<vmem>>, vector<6x128xf32>
    %1 = vector.extract_strided_slice %0 {offsets = [0, 0], sizes = [1, 128], strides = [1, 1]} : vector<6x128xf32> to vector<1x128xf32>
    %2 = vector.extract_strided_slice %0 {offsets = [1, 0], sizes = [1, 128], strides = [1, 1]} : vector<6x128xf32> to vector<1x128xf32>
    %3 = vector.extract_strided_slice %0 {offsets = [2, 0], sizes = [1, 128], strides = [1, 1]} : vector<6x128xf32> to vector<1x128xf32>
    %4 = vector.extract_strided_slice %0 {offsets = [3, 0], sizes = [1, 128], strides = [1, 1]} : vector<6x128xf32> to vector<1x128xf32>
    %5 = vector.extract_strided_slice %0 {offsets = [4, 0], sizes = [1, 128], strides = [1, 1]} : vector<6x128xf32> to vector<1x128xf32>
    %6 = vector.extract_strided_slice %0 {offsets = [5, 0], sizes = [1, 128], strides = [1, 1]} : vector<6x128xf32> to vector<1x128xf32>
    %7 = arith.mulf %1, %2 : vector<1x128xf32>
    %cst = arith.constant 0.000000e+00 : f32
    %8 = vector.broadcast %cst : f32 to vector<6x128xf32>
    %c0_1 = arith.constant 0 : index
    %c0_2 = arith.constant 0 : index
    %9 = vector.load %arg2[%c0_1, %c0_2] : memref<6x128xf32, #tpu.memory_space<vmem>>, vector<6x128xf32>
    tpu.vector_store %arg2[%c0_1, %c0_2], %8 {strides = array<i32>} : memref<6x128xf32, #tpu.memory_space<vmem>>, vector<6x128xf32>,
    %10 = arith.mulf %3, %1 : vector<1x128xf32>
    %11 = arith.mulf %4, %7 : vector<1x128xf32>
    %12 = arith.subf %10, %11 : vector<1x128xf32>
    %c0_3 = arith.constant 0 : index
    %c0_4 = arith.constant 0 : index
    %13 = vector.load %arg2[%c0_3, %c0_4] : memref<6x128xf32, #tpu.memory_space<vmem>>, vector<1x128xf32>
    tpu.vector_store %arg2[%c0_3, %c0_4], %12 {strides = array<i32>} : memref<6x128xf32, #tpu.memory_space<vmem>>, vector<1x128xf32>,
    %14 = arith.mulf %6, %7 : vector<1x128xf32>
    %15 = arith.mulf %5, %2 : vector<1x128xf32>
    %16 = arith.subf %14, %15 : vector<1x128xf32>
    %c1 = arith.constant 1 : index
    %c0_5 = arith.constant 0 : index
    %17 = vector.load %arg2[%c1, %c0_5] : memref<6x128xf32, #tpu.memory_space<vmem>>, vector<1x128xf32>
    tpu.vector_store %arg2[%c1, %c0_5], %16 {strides = array<i32>} : memref<6x128xf32, #tpu.memory_space<vmem>>, vector<1x128xf32>,
    return
  }
  func.func @transform_0(%arg0: i32) -> (i32, i32) {
    %c0_i32 = arith.constant 0 : i32
    %c0_i32_0 = arith.constant 0 : i32
    return %c0_i32, %arg0 : i32, i32
  }
  func.func @transform_1(%arg0: i32) -> (i32, i32) {
    %c0_i32 = arith.constant 0 : i32
    %c0_i32_0 = arith.constant 0 : i32
    return %c0_i32, %arg0 : i32, i32
  }
}

</mosaic_0001>

<llo_original>
// kernel: tpu_custom_call.1
$region0: #{tpu_custom_call.1}
  #allocation0 [shape = 'u32[]', space=smem, size = 0x4, offset = 0x4, fixed_abs, tag = 'smem constant byte address 0x4 - core index']
  #allocation1 [shape = 'u32[144,128]{1,0:T(1,128)}', space=vmem, size = 0x12000, scoped, tag = 'internal scratch']
  %s0 = inlined_call_operand.hbm [shape: f32[6,128], index: 0, kind: input, shape index: {}]
  %s1 = inlined_call_operand.hbm [shape: f32[6,128], index: 1, kind: output, shape index: {}]
  %s2 = sld [smem:[#allocation0]]
  $region18: #{tpu_custom_call.1} parent=0
    _
  %s4 = ssub.s32 1, %s2
  %s5 = scalar_select 0, %s4, %s2
  $region1: #{tpu_custom_call.1} parent=0
    #allocation2 [shape = 'u8[4096]{0}', space=vmem, size = 0x1000, scoped, tag = 'input window, operand 0, single buffered']
    #allocation3 [shape = 's32[1]{0}', space=sflag, size = 0x4, scoped, tag = 'scoped memory for tpu_custom_call.1']
    #allocation4 [shape = 's32[1]{0}', space=sflag, size = 0x4, scoped, tag = 'scoped memory for tpu_custom_call.1']
    #allocation5 [shape = 'u8[4096]{0}', space=vmem, size = 0x1000, scoped, tag = 'output window, operand 0, single buffered']
    %6 = vsyncpa [#allocation3], 0
    %7 = vsyncpa [#allocation4], 0
    // Predicated region
    $region2: #{tpu_custom_call.1} parent=1 // pred_check
      _
    $region3: #{tpu_custom_call.1} parent=1 // pred_check_branch
      %9 = sbr.rel (0) target = $region5
    $region4: #{tpu_custom_call.1} parent=1 // pred_region
      %s11 = ssub.s32 128, 128
      %12 = vsyncadd [#allocation3], %s11
      %s14 = sshll.u32 [#allocation2], 4
      %s15 = int_to_ptr.vmem [resolvable:$true] %s14
      %17 = dma.hbm_to_vmem [thread:$0]  %s0, 128, %s15, [#allocation3]
    $region5: #{tpu_custom_call.1} parent=1 // pred_fallthru
      _
    // Predicated region
    $region6: #{tpu_custom_call.1} parent=1 // pred_check
      _
    $region7: #{tpu_custom_call.1} parent=1 // pred_check_branch
      %19 = sbr.rel (0) target = $region9
    $region8: #{tpu_custom_call.1} parent=1 // pred_region
      %20 = dma.done [#allocation3], 128
    $region9: #{tpu_custom_call.1} parent=1 // pred_fallthru
      _
    %v21 = vld [vmem:[#allocation2] sm:$0x3f]
    %v23 = vrot.slane %v21, 1
    %v25 = vmul.f32 %v21, %v23
    %26 = vst [vmem:[#allocation5] sm:$0x3f] 0.0
    %v27 = vrot.slane %v21, 6
    %v29 = vmul.f32 %v21, %v27
    %v31 = vrot.slane %v25, 5
    %v33 = vmul.f32 %v21, %v31
    %v35 = vrot.slane %v33, 1
    %v37 = vsub.f32 %v29, %v35
    %38 = vst [vmem:[#allocation5 - $0x2] sm:$0x4] %v37
    %v39 = vrot.slane %v25, 3
    %v41 = vmul.f32 %v21, %v39
    %v42 = vrot.slane %v21, 5
    %v44 = vmul.f32 %v21, %v42
    %v46 = vrot.slane %v44, 7
    %v48 = vsub.f32 %v41, %v46
    %49 = vst [vmem:[#allocation5 - $0x4] sm:$0x20] %v48
    // Predicated region
    $region10: #{tpu_custom_call.1} parent=1 // pred_check
      _
    $region11: #{tpu_custom_call.1} parent=1 // pred_check_branch
      %51 = sbr.rel (0) target = $region13
    $region12: #{tpu_custom_call.1} parent=1 // pred_region
      %s53 = ssub.s32 128, 128
      %54 = vsyncadd [#allocation4], %s53
      %s56 = sshll.u32 [#allocation5], 4
      %s57 = int_to_ptr.vmem [resolvable:$true] %s56
      %59 = dma.vmem_to_hbm [thread:$0]  %s57, 128, %s1, [#allocation4]
    $region13: #{tpu_custom_call.1} parent=1 // pred_fallthru
      _
    // Predicated region
    $region14: #{tpu_custom_call.1} parent=1 // pred_check
      _
    $region15: #{tpu_custom_call.1} parent=1 // pred_check_branch
      %61 = sbr.rel (0) target = $region17
    $region16: #{tpu_custom_call.1} parent=1 // pred_region
      %62 = dma.done [#allocation4], 128
    $region17: #{tpu_custom_call.1} parent=1 // pred_fallthru
      _
    %63 = vsyncpa [#allocation3], 1
    %64 = vsyncpa [#allocation4], 1

</llo_original>
